<compile_context>
chip_gen: v6e
topology: v6e:2x2x1
jax: 0.10.0
libtpu: 0.0.40
codegen_flags: <defaults>
</compile_context>

<pallas_src>
import functools

import jax
import jax.numpy as jnp
from jax.experimental import pallas as pl
from jax.experimental.pallas import tpu as pltpu

EPS = 1e-5
_VMEM_LIMIT = 32 * 1024 * 1024   # legal on v5e/v6e (128 MiB) and v7x (64 MiB)


def _round_up(x, m):
    return ((x + m - 1) // m) * m


# ----------------------------- Pallas kernels ------------------------------

def _fused_conv_bn_kernel(m_real, p_ref, w_ref, g_ref, b_ref, o_ref):
    """Single-tile path: folded conv matmul + BatchNorm fully on-chip.

    p_ref: (K, Mp)     bf16 im2col patches (lanes = output positions)
    w_ref: (Cout, K)   bf16 folded conv weights
    g_ref: (Cout, 1)   f32 BatchNorm gamma
    b_ref: (Cout, 1)   f32 BatchNorm beta
    o_ref: (Cout, Mp)  f32 normalized output (lane-dense store)
    """
    y = jnp.dot(w_ref[...], p_ref[...], preferred_element_type=jnp.float32)
    inv_m = 1.0 / m_real                              # static Python float
    mean = jnp.sum(y, axis=1, keepdims=True) * inv_m  # zero-padded cols add 0
    var = jnp.maximum(
        jnp.sum(y * y, axis=1, keepdims=True) * inv_m - mean * mean, 0.0)
    scale = g_ref[...] * jax.lax.rsqrt(var + EPS)
    shift = b_ref[...] - mean * scale
    o_ref[...] = (y * scale + shift).astype(o_ref.dtype)


def _conv_stats_kernel(p_ref, w_ref, y_ref, s1_ref, s2_ref):
    """Tiled path: folded conv matmul + per-tile BN partial sums.

    p_ref:  (K, TILE_M)    bf16 patches tile (lane-dense)
    w_ref:  (Cout, K)      bf16 folded weights (resident across the grid)
    y_ref:  (Cout, TILE_M) f32 pre-BN conv output (lane-dense store)
    s1_ref: (1, Cout, 1)   per-tile per-channel sum
    s2_ref: (1, Cout, 1)   per-tile per-channel sum of squares
    """
    y = jnp.dot(w_ref[...], p_ref[...], preferred_element_type=jnp.float32)
    y_ref[...] = y.astype(y_ref.dtype)
    s1_ref[...] = jnp.sum(y, axis=1, keepdims=True)[None]
    s2_ref[...] = jnp.sum(y * y, axis=1, keepdims=True)[None]


# ------------------------------ pallas_call wrappers ------------------------

def _conv_with_stats(patches_t, w_mat, tile_m):
    K, Mp = patches_t.shape
    Cout = w_mat.shape[0]
    num_tiles = Mp // tile_m
    return pl.pallas_call(
        _conv_stats_kernel,
        out_shape=(
            jax.ShapeDtypeStruct((Cout, Mp), jnp.float32),
            jax.ShapeDtypeStruct((num_tiles, Cout, 1), jnp.float32),
            jax.ShapeDtypeStruct((num_tiles, Cout, 1), jnp.float32),
        ),
        grid=(num_tiles,),
        in_specs=[
            pl.BlockSpec((K, tile_m), lambda i: (0, i)),      # patches tile
            pl.BlockSpec((Cout, K), lambda i: (0, 0)),        # resident weights
        ],
        out_specs=(
            pl.BlockSpec((Cout, tile_m), lambda i: (0, i)),   # y (lane-dense)
            pl.BlockSpec((1, Cout, 1), lambda i: (i, 0, 0)),  # per-tile sum
            pl.BlockSpec((1, Cout, 1), lambda i: (i, 0, 0)),  # per-tile sum^2
        ),
        compiler_params=pltpu.CompilerParams(
            dimension_semantics=("parallel",),
            vmem_limit_bytes=_VMEM_LIMIT,
        ),
    )(patches_t, w_mat)


# ------------------------------- JAX glue -----------------------------------

def _space_to_depth_patches(x_nchw, ksize=3, stride=3, pad=1):
    """NCHW -> (ksize*ksize*C, N*Ho*Wo) patches with M last (lane axis).

    Valid because stride == ksize (taps never overlap): the gather is just a
    pad + crop + reshape + one transpose, no 9-way strided-slice stack.
    """
    N, C, H, W = x_nchw.shape
    Ho = (H + 2 * pad - ksize) // stride + 1
    Wo = (W + 2 * pad - ksize) // stride + 1
    xp = jnp.pad(x_nchw, ((0, 0), (0, 0), (pad, pad), (pad, pad)))
    xp = xp[:, :, :ksize * Ho, :ksize * Wo]
    xp = xp.reshape(N, C, Ho, ksize, Wo, ksize)
    # (N, C, Ho, kh, Wo, kw) -> (kh, kw, C, N, Ho, Wo) -> (K, M)
    patches_t = jnp.transpose(xp, (3, 5, 1, 0, 2, 4))
    patches_t = patches_t.reshape(ksize * ksize * C, N * Ho * Wo)
    return patches_t, Ho, Wo


def _choose_tiling(M, K):
    """Pad M to a multiple of 128 and pick a lane tile that (a) divides the
    padded extent with <= 1/8 padding waste, (b) keeps double-buffered bf16
    patches well under the scoped-VMEM budget (v7x: 64 MiB physical), and
    (c) yields >= 2 tiles whenever possible so both v7x TensorCores get work."""
    m128 = _round_up(max(M, 1), 128)
    nb = m128 // 128
    if nb == 1:
        return 128, 128
    bytes_per_128_cols = 2 * K * 2 * 128        # double-buffered bf16 patches
    cap_b = max(1, min(16, (12 << 20) // bytes_per_128_cols))
    cap_b = max(1, min(cap_b, nb // 2))         # at least two tiles
    tile_b = 1
    for b in range(cap_b, 0, -1):
        padded = _round_up(nb, b)
        if padded - nb <= padded // 8:          # bounded padding waste
            tile_b = b
            break
    Mp = _round_up(nb, tile_b) * 128
    return Mp, tile_b * 128


@jax.jit
def fpn_block(x_nchw, w1, w3, gamma, beta):
    """Forward pass of FPN_block; NCHW in/out like the PyTorch module."""
    N, Cin, H, W = x_nchw.shape
    Cout = w3.shape[0]

    # Fold conv1x1 into conv3x3: W_eff[o,i,kh,kw] = sum_c W3[o,c,kh,kw]*W1[c,i].
    w_eff = jnp.einsum('ocuv,ci->oiuv', w3, w1[:, :, 0, 0])            # (Cout,Cin,3,3)
    w_mat = jnp.transpose(w_eff, (0, 2, 3, 1)).reshape(Cout, 9 * Cin)  # (Cout, K)
    w_mat = w_mat.astype(jnp.bfloat16)

    # TODO(synk): the space-to-depth im2col relayout stays as (bf16) XLA glue;
    # doing it inside the kernel would need a manual strided-DMA gather.
    patches_t, Ho, Wo = _space_to_depth_patches(x_nchw.astype(jnp.bfloat16))
    K, M = patches_t.shape

    Mp, tile_m = _choose_tiling(M, K)
    patches_t = jnp.pad(patches_t, ((0, 0), (0, Mp - M)))
    num_tiles = Mp // tile_m

    if num_tiles == 1:
        # Whole problem fits one VMEM-resident tile: a single fused kernel does
        # conv + stats + rsqrt + affine with no intermediate HBM traffic.
        out_cm = pl.pallas_call(
            functools.partial(_fused_conv_bn_kernel, float(M)),
            out_shape=jax.ShapeDtypeStruct((Cout, Mp), jnp.float32),
            grid=(1,),
            in_specs=[
                pl.BlockSpec((K, Mp), lambda i: (0, 0)),
                pl.BlockSpec((Cout, K), lambda i: (0, 0)),
                pl.BlockSpec((Cout, 1), lambda i: (0, 0)),
                pl.BlockSpec((Cout, 1), lambda i: (0, 0)),
            ],
            out_specs=pl.BlockSpec((Cout, Mp), lambda i: (0, 0)),
            compiler_params=pltpu.CompilerParams(vmem_limit_bytes=_VMEM_LIMIT),
        )(patches_t, w_mat,
          gamma.astype(jnp.float32).reshape(Cout, 1),
          beta.astype(jnp.float32).reshape(Cout, 1))
    else:
        # Pass 1 (Pallas): conv matmul + exact per-tile BN partial statistics.
        y_t, s1, s2 = _conv_with_stats(patches_t, w_mat, tile_m)
        # Finalize statistics over the real M columns (tiny O(Cout) work;
        # zero-padded columns contribute nothing to the partial sums).
        mean = jnp.sum(s1[:, :, 0], axis=0) / M
        var = jnp.maximum(jnp.sum(s2[:, :, 0], axis=0) / M - mean * mean, 0.0)
        scale = gamma.astype(jnp.float32) * jax.lax.rsqrt(var + EPS)
        shift = beta.astype(jnp.float32) - mean * scale
        # Per-channel affine folded into the XLA epilogue so it fuses with the
        # slice/reshape/transpose below: one read of y_t, one output write.
        out_cm = y_t * scale[:, None] + shift[:, None]

    out = out_cm[:, :M].reshape(Cout, N, Ho, Wo)
    return jnp.transpose(out, (1, 0, 2, 3))


# --------------------------------- test --------------------------------------

def _reference(x, w1, w3, gamma, beta):
    """Independent f32 reference: two XLA convs + training-mode BatchNorm."""
    dn1 = jax.lax.conv_dimension_numbers(x.shape, w1.shape, ('NCHW', 'OIHW', 'NCHW'))
    y1 = jax.lax.conv_general_dilated(x, w1, (1, 1), 'VALID', dimension_numbers=dn1)
    dn3 = jax.lax.conv_dimension_numbers(y1.shape, w3.shape, ('NCHW', 'OIHW', 'NCHW'))
    y2 = jax.lax.conv_general_dilated(y1, w3, (3, 3), ((1, 1), (1, 1)),
                                      dimension_numbers=dn3)
    mu = jnp.mean(y2, axis=(0, 2, 3), keepdims=True)
    vv = jnp.mean((y2 - mu) ** 2, axis=(0, 2, 3), keepdims=True)
    return ((y2 - mu) * jax.lax.rsqrt(vv + EPS)
            * gamma[None, :, None, None] + beta[None, :, None, None])


if __name__ == "__main__":
    key = jax.random.PRNGKey(0)
    Cin, Cout = 4, 8
    k_w1, k_w3, k_x1, k_x2 = jax.random.split(key, 4)

    # Shapes match nn.Conv2d / nn.BatchNorm2d parameters (bias=False convs).
    w1 = jax.random.normal(k_w1, (Cout, Cin, 1, 1), dtype=jnp.float32) * 0.1
    w3 = jax.random.normal(k_w3, (Cout, Cout, 3, 3), dtype=jnp.float32) * 0.1
    gamma = jnp.ones((Cout,), dtype=jnp.float32)   # BatchNorm weight default
    beta = jnp.zeros((Cout,), dtype=jnp.float32)   # BatchNorm bias default

    # Case 1: shipped small shape -> single fused conv+BN kernel (one tile).
    x1 = jax.random.normal(k_x1, (2, Cin, 16, 16), dtype=jnp.float32)
    out1 = jax.block_until_ready(fpn_block(x1, w1, w3, gamma, beta))
    assert out1.shape == (2, Cout, 6, 6), out1.shape   # (16+2-3)//3 + 1 = 6
    ref1 = _reference(x1, w1, w3, gamma, beta)
    # bf16 matmul operands (f32 accumulation) -> relaxed tolerance vs f32 ref.
    assert jnp.allclose(out1, ref1, rtol=5e-2, atol=5e-2), \
        float(jnp.max(jnp.abs(out1 - ref1)))

    # Case 2: larger spatial -> tiled conv+stats kernel (2 lane tiles) with the
    # BN affine fused into the XLA epilogue.
    x2 = jax.random.normal(k_x2, (2, Cin, 48, 48), dtype=jnp.float32)
    out2 = jax.block_until_ready(fpn_block(x2, w1, w3, gamma, beta))
    assert out2.shape == (2, Cout, 16, 16), out2.shape
    ref2 = _reference(x2, w1, w3, gamma, beta)
    assert jnp.allclose(out2, ref2, rtol=5e-2, atol=5e-2), \
        float(jnp.max(jnp.abs(out2 - ref2)))

    print("KERNEL_OK")
</pallas_src>

<mosaic_0001>
module attributes {stable_mosaic.version = 11 : i64} {
  func.func @_fused_conv_bn_kernel(%arg0: i32, %arg1: memref<36x128xbf16, #tpu.memory_space<vmem>>, %arg2: memref<8x36xbf16, #tpu.memory_space<vmem>>, %arg3: memref<8x1xf32, #tpu.memory_space<vmem>>, %arg4: memref<8x1xf32, #tpu.memory_space<vmem>>, %arg5: memref<8x128xf32, #tpu.memory_space<vmem>>) attributes {dimension_semantics = [#tpu.dimension_semantics<arbitrary>], iteration_bounds = array<i64: 1>, scalar_prefetch = 0 : i64, scratch_operands = 0 : i64, tpu.core_type = #tpu.core_type<tc>, window_params = [{pipeline_mode = #tpu.pipeline_mode<synchronous>, transform_indices = @transform_0, window_bounds = array<i64: 36, 128>}, {pipeline_mode = #tpu.pipeline_mode<synchronous>, transform_indices = @transform_1, window_bounds = array<i64: 8, 36>}, {pipeline_mode = #tpu.pipeline_mode<synchronous>, transform_indices = @transform_2, window_bounds = array<i64: 8, 1>}, {pipeline_mode = #tpu.pipeline_mode<synchronous>, transform_indices = @transform_3, window_bounds = array<i64: 8, 1>}, {pipeline_mode = #tpu.pipeline_mode<synchronous>, transform_indices = @transform_4, window_bounds = array<i64: 8, 128>}]} {
    %c0 = arith.constant 0 : index
    %c0_0 = arith.constant 0 : index
    %0 = vector.load %arg2[%c0, %c0_0] : memref<8x36xbf16, #tpu.memory_space<vmem>>, vector<8x36xbf16>
    %c0_1 = arith.constant 0 : index
    %c0_2 = arith.constant 0 : index
    %1 = vector.load %arg1[%c0_1, %c0_2] : memref<36x128xbf16, #tpu.memory_space<vmem>>, vector<36x128xbf16>
    %cst = arith.constant dense<0.000000e+00> : vector<8x128xf32>
    %2 = tpu.matmul %0, %1, %cst {dimension_numbers = #tpu.dot_dimension_numbers<[1], [0], [0], [1], [0, 0, 1, 1], [], []>} : vector<8x36xbf16>, vector<36x128xbf16>, vector<8x128xf32> -> vector<8x128xf32>
    %cst_3 = arith.constant dense<0.000000e+00> : vector<8xf32>
    %3 = vector.multi_reduction <add>, %2, %cst_3 [1] : vector<8x128xf32> to vector<8xf32>
    %4 = vector.shape_cast %3 : vector<8xf32> to vector<8x1xf32>
    %cst_4 = arith.constant 0.013888889 : f32
    %5 = vector.broadcast %cst_4 : f32 to vector<8x1xf32>
    %6 = arith.mulf %4, %5 : vector<8x1xf32>
    %7 = arith.mulf %2, %2 : vector<8x128xf32>
    %cst_5 = arith.constant dense<0.000000e+00> : vector<8xf32>
    %8 = vector.multi_reduction <add>, %7, %cst_5 [1] : vector<8x128xf32> to vector<8xf32>
    %9 = vector.shape_cast %8 : vector<8xf32> to vector<8x1xf32>
    %cst_6 = arith.constant 0.013888889 : f32
    %10 = vector.broadcast %cst_6 : f32 to vector<8x1xf32>
    %11 = arith.mulf %9, %10 : vector<8x1xf32>
    %12 = arith.mulf %6, %6 : vector<8x1xf32>
    %13 = arith.subf %11, %12 : vector<8x1xf32>
    %cst_7 = arith.constant 0.000000e+00 : f32
    %14 = vector.broadcast %cst_7 : f32 to vector<8x1xf32>
    %15 = arith.maximumf %13, %14 : vector<8x1xf32>
    %c0_8 = arith.constant 0 : index
    %c0_9 = arith.constant 0 : index
    %16 = vector.load %arg3[%c0_8, %c0_9] : memref<8x1xf32, #tpu.memory_space<vmem>>, vector<8x1xf32>
    %cst_10 = arith.constant 9.99999974E-6 : f32
    %17 = vector.broadcast %cst_10 : f32 to vector<8x1xf32>
    %18 = arith.addf %15, %17 : vector<8x1xf32>
    %19 = math.rsqrt %18 : vector<8x1xf32>
    %20 = arith.mulf %16, %19 : vector<8x1xf32>
    %c0_11 = arith.constant 0 : index
    %c0_12 = arith.constant 0 : index
    %21 = vector.load %arg4[%c0_11, %c0_12] : memref<8x1xf32, #tpu.memory_space<vmem>>, vector<8x1xf32>
    %22 = arith.mulf %6, %20 : vector<8x1xf32>
    %23 = arith.subf %21, %22 : vector<8x1xf32>
    %24 = vector.broadcast %20 : vector<8x1xf32> to vector<8x128xf32>
    %25 = arith.mulf %2, %24 : vector<8x128xf32>
    %26 = vector.broadcast %23 : vector<8x1xf32> to vector<8x128xf32>
    %27 = arith.addf %25, %26 : vector<8x128xf32>
    %c0_13 = arith.constant 0 : index
    %c0_14 = arith.constant 0 : index
    %28 = vector.load %arg5[%c0_13, %c0_14] : memref<8x128xf32, #tpu.memory_space<vmem>>, vector<8x128xf32>
    tpu.vector_store %arg5[%c0_13, %c0_14], %27 {strides = array<i32>} : memref<8x128xf32, #tpu.memory_space<vmem>>, vector<8x128xf32>,
    return
  }
  func.func @transform_0(%arg0: i32) -> (i32, i32) {
    %c0_i32 = arith.constant 0 : i32
    %c0_i32_0 = arith.constant 0 : i32
    %c0_i32_1 = arith.constant 0 : i32
    return %c0_i32, %c0_i32_0 : i32, i32
  }
  func.func @transform_1(%arg0: i32) -> (i32, i32) {
    %c0_i32 = arith.constant 0 : i32
    %c0_i32_0 = arith.constant 0 : i32
    %c0_i32_1 = arith.constant 0 : i32
    return %c0_i32, %c0_i32_0 : i32, i32
  }
  func.func @transform_2(%arg0: i32) -> (i32, i32) {
    %c0_i32 = arith.constant 0 : i32
    %c0_i32_0 = arith.constant 0 : i32
    %c0_i32_1 = arith.constant 0 : i32
    return %c0_i32, %c0_i32_0 : i32, i32
  }
  func.func @transform_3(%arg0: i32) -> (i32, i32) {
    %c0_i32 = arith.constant 0 : i32
    %c0_i32_0 = arith.constant 0 : i32
    %c0_i32_1 = arith.constant 0 : i32
    return %c0_i32, %c0_i32_0 : i32, i32
  }
  func.func @transform_4(%arg0: i32) -> (i32, i32) {
    %c0_i32 = arith.constant 0 : i32
    %c0_i32_0 = arith.constant 0 : i32
    %c0_i32_1 = arith.constant 0 : i32
    return %c0_i32, %c0_i32_0 : i32, i32
  }
}

</mosaic_0001>

<llo_original>
// kernel: fpn_block.1
$region0: #{fpn_block.1}
  #allocation0 [shape = 'u32[]', space=smem, size = 0x4, offset = 0x4, fixed_abs, tag = 'smem constant byte address 0x4 - core index']
  #allocation1 [shape = 'u32[144,128]{1,0:T(1,128)}', space=vmem, size = 0x12000, scoped, tag = 'internal scratch']
  %s0 = inlined_call_operand.vmem [shape: bf16[36,128], index: 0, kind: input, shape index: {}]
  %s1 = inlined_call_operand.vmem [shape: bf16[8,36], index: 1, kind: input, shape index: {}]
  %s2 = inlined_call_operand.vmem [shape: f32[8,1], index: 2, kind: input, shape index: {}]
  %s3 = inlined_call_operand.vmem [shape: f32[8,1], index: 3, kind: input, shape index: {}]
  %s4 = inlined_call_operand.vmem [shape: f32[8,128], index: 4, kind: output, shape index: {}]
  %s5 = sld [smem:[#allocation0]]
  $region26: #{fpn_block.1} parent=0
    _
  %s7 = ssub.s32 1, %s5
  %s8 = scalar_select 0, %s7, %s5
  // Predicated region
  $region2: #{fpn_block.1} parent=0 // pred_check
    _
  $region3: #{fpn_block.1} parent=0 // pred_check_branch
    %10 = sbr.rel (0) target = $region5
  $region4: #{fpn_block.1} parent=0 // pred_region
    _
  $region5: #{fpn_block.1} parent=0 // pred_fallthru
    _
  // Predicated region
  $region6: #{fpn_block.1} parent=0 // pred_check
    _
  $region7: #{fpn_block.1} parent=0 // pred_check_branch
    %12 = sbr.rel (0) target = $region9
  $region8: #{fpn_block.1} parent=0 // pred_region
    _
  $region9: #{fpn_block.1} parent=0 // pred_fallthru
    _
  // Predicated region
  $region10: #{fpn_block.1} parent=0 // pred_check
    _
  $region11: #{fpn_block.1} parent=0 // pred_check_branch
    %14 = sbr.rel (0) target = $region13
  $region12: #{fpn_block.1} parent=0 // pred_region
    _
  $region13: #{fpn_block.1} parent=0 // pred_fallthru
    _
  // Predicated region
  $region14: #{fpn_block.1} parent=0 // pred_check
    _
  $region15: #{fpn_block.1} parent=0 // pred_check_branch
    %16 = sbr.rel (0) target = $region17
  $region16: #{fpn_block.1} parent=0 // pred_region
    _
  $region17: #{fpn_block.1} parent=0 // pred_fallthru
    _
  %v18 = vld [vmem:[%s1] sm:$0xf]
  %v19 = vld [vmem:[%s0] sm:$0xf]
  %v20 = vld [vmem:[%s0 + $0x4] sm:$0xf]
  %v21 = vld [vmem:[%s0 + $0x8] sm:$0xf]
  %v22 = vld [vmem:[%s0 + $0xc] sm:$0xf]
  %v23 = vld [vmem:[%s0 + $0x10] sm:$0x3]
  %v29 = vunpack.c.l.b16 %v19
  %v30 = vunpack.c.l.b16 %v20
  %v31 = vunpack.c.l.b16 %v21
  %v32 = vunpack.c.l.b16 %v22
  %v33 = vunpack.c.l.b16 %v23
  %v34 = vpack.c.b16 %v30, %v29
  %v35 = vpack.c.b16 %v32, %v31
  %v36 = vpack.c.b16 %v33, %v33
  %vm39 = vcmask 293888
  %v41 = vsel %vm39, %v18, 0
  %vm43 = vcmask 1041408
  %v45 = vsel %vm43, %v36, 0
  %47 = vmatprep.subr.bf16.mxu0 0
  %48 = vmatpush1.bf16.msra.mxu0 0
  %49 = vmatprep.subr.bf16.mxu0 0
  %50 = vmatpush1.bf16.msra.mxu0 0
  %51 = vmatprep.subr.bf16.mxu0 0
  %52 = vmatpush1.bf16.msra.mxu0 0
  %53 = vmatprep.subr.bf16.mxu0 0
  %54 = vmatpush1.bf16.msra.mxu0 0
  %55 = vmatprep.subr.bf16.mxu0 0
  %56 = vmatpush1.bf16.msra.mxu0 0
  %57 = vmatprep.subr.bf16.mxu0 0
  %58 = vmatpush1.bf16.msra.mxu0 %v45
  %59 = vmatprep.subr.bf16.mxu0 0
  %60 = vmatpush1.bf16.msra.mxu0 %v35
  %61 = vmatprep.subr.bf16.mxu0 0
  %62 = vmatpush1.bf16.msra.mxu0 %v34
  %63 = vmatprep.subr.bf16.mxu0 0
  %64 = vmatpush2.bf16.msra.mxu0 0
  %65 = vmatprep.subr.bf16.mxu0 0
  %66 = vmatpush2.bf16.msra.mxu0 0
  %67 = vmatprep.subr.bf16.mxu0 0
  %68 = vmatpush2.bf16.msra.mxu0 0
  %69 = vmatprep.subr.bf16.mxu0 0
  %70 = vmatpush2.bf16.msra.mxu0 0
  %71 = vmatprep.subr.bf16.mxu0 0
  %72 = vmatpush2.bf16.msra.mxu0 0
  %73 = vmatprep.subr.bf16.mxu0 0
  %74 = vmatpush2.bf16.msra.mxu0 0
  %75 = vmatprep.subr.bf16.mxu0 0
  %76 = vmatpush2.bf16.msra.mxu0 0
  %77 = vmatprep.subr.bf16.mxu0 0
  %78 = vmatpush2.bf16.msra.mxu0 0
  %79 = vmatprep.mubr.bf16.mxu0 0
  %80 = vmatmul.mubr.bf16.gmra.mxu0 %v41
  %v81 = vpop.f32.mrf.mxu0
  %v82 = vadd.f32 0.0, %v81
  %v83 = vpop.f32.mrf.mxu0
  %v84 = vpop.f32.mrf.mxu0
  %v85 = vpop.f32.mrf.mxu0
  %86 = vdwg.mxu0
  %87 = vadd.xlane.f32.xlu0 %v82
  %v88 = vpop.xlane.xlu0 %87
  %v89 = vmul.f32 %v88, 0.013888889
  %v90 = vmul.f32 %v82, %v82
  %91 = vadd.xlane.f32.xlu0 %v90
  %v92 = vpop.xlane.xlu0 %91
  %v93 = vmul.f32 %v92, 0.013888889
  %v94 = vmul.f32 %v89, %v89
  %v95 = vsub.f32 %v93, %v94
  %v96 = vmax.f32 %v95, 0.0
  %v97 = vld [vmem:[%s2] sm:$0xff]
  %v98 = vadd.f32 %v96, 1e-05
  %v99 = vrsqrt.pop %v98
  %v100 = vmul.f32 %v97, %v99
  %v101 = vld [vmem:[%s3] sm:$0xff]
  %v102 = vmul.f32 %v89, %v100
  %v103 = vsub.f32 %v101, %v102
  %105 = vset.pattern.permute.xlu0 0
  %106 = vperm.xlu0 %105, %v100
  %v107 = vpop.permute.xlu0 %106
  %v109 = vmul.f32 %v82, %v107
  %111 = vset.pattern.permute.xlu0 0
  %112 = vperm.xlu0 %111, %v103
  %v113 = vpop.permute.xlu0 %112
  %v115 = vadd.f32 %v109, %v113
  %116 = vst [vmem:[%s4] sm:$0xff] %v115
  // Predicated region
  $region18: #{fpn_block.1} parent=0 // pred_check
    _
  $region19: #{fpn_block.1} parent=0 // pred_check_branch
    %118 = sbr.rel (0) target = $region21
  $region20: #{fpn_block.1} parent=0 // pred_region
    _
  $region21: #{fpn_block.1} parent=0 // pred_fallthru
    _
  // Predicated region
  $region22: #{fpn_block.1} parent=0 // pred_check
    _
  $region23: #{fpn_block.1} parent=0 // pred_check_branch
    %120 = sbr.rel (0) target = $region25
  $region24: #{fpn_block.1} parent=0 // pred_region
    _
  $region25: #{fpn_block.1} parent=0 // pred_fallthru
    _

</llo_original>
